<compile_context>
chip_gen: v5e
topology: v5e:2x2
jax: 0.10.0
libtpu: 0.0.40
codegen_flags: <defaults>
</compile_context>

<pallas_src>
import functools

import jax
import jax.numpy as jnp
from jax import lax
from jax.experimental import pallas as pl
from jax.experimental.pallas import tpu as pltpu


def _sepconv_kernel(x_ref, top_ref, bot_ref, dw_ref, pw_ref, shift_ref, out_ref,
                    *, row_w):
    # x_ref:     (1, C, TS)    spatial tile; C on sublanes, TS = TH*W rows on lanes
    # top_ref:   (1, 1, C, W)  image row above the tile (zeros at the image border)
    # bot_ref:   (1, 1, C, W)  image row below the tile (zeros at the image border)
    # dw_ref:    (3, 3, C, 1)  depthwise 3x3 weights, f32
    # pw_ref:    (Cout, C)     pointwise weights with BN scale folded in
    # shift_ref: (Cout, 1)     folded conv-bias + BN shift, f32
    # out_ref:   (1, Cout, TS) lane-dense, NCHW-ordered output tile
    W = row_w
    _, C, TS = x_ref.shape

    x = x_ref[0]                                  # (C, TS), f32
    top = top_ref[0, 0]                           # (C, W)
    bot = bot_ref[0, 0]                           # (C, W)

    # ---- row (+-1) neighbours: one lane concatenation each (no VMEM scratch
    # round trip, no sublane-unaligned copies). ----
    r_up = jnp.concatenate([top, x[:, : TS - W]], axis=1)    # row t-1
    r_dn = jnp.concatenate([x[:, W:], bot], axis=1)          # row t+1

    # ---- depthwise 3x3 (VPU): per-column-tap weighted row sums at unshifted
    # positions; the (C, 1) weights broadcast along lanes (channels already sit
    # on sublanes, so no relayout). ----
    w = dw_ref[...]                               # (3, 3, C, 1)

    def col_tap(kw):
        return r_up * w[0, kw] + x * w[1, kw] + r_dn * w[2, kw]

    t_l, t_c, t_r = col_tap(0), col_tap(1), col_tap(2)

    # +-1 column shift via lane slices (XLU lane shift; pltpu.roll(t, 1/-1,
    # axis=1) is the equivalent alternative) + iota-based edge mask so the
    # first/last column of every image row gets zero padding.
    lane = lax.broadcasted_iota(jnp.int32, (1, TS), 1)
    wpos = lane % W
    sh_l = jnp.concatenate([t_l[:, :1], t_l[:, : TS - 1]], axis=1)   # t_l at col j-1
    sh_r = jnp.concatenate([t_r[:, 1:], t_r[:, TS - 1:]], axis=1)    # t_r at col j+1
    acc = t_c
    acc = acc + jnp.where(wpos == 0, 0.0, sh_l)
    acc = acc + jnp.where(wpos == W - 1, 0.0, sh_r)

    # ---- pointwise 1x1 on the MXU: (Cout, C) x (C, TS), K = C on the
    # activation's sublanes, spatial on lanes -> lane-dense NCHW result. ----
    y = jnp.dot(pw_ref[...], acc.astype(pw_ref.dtype),
                preferred_element_type=jnp.float32)           # (Cout, TS)

    # Folded conv-bias + BatchNorm(eval) shift, then Swish.
    y = y + shift_ref[...]
    y = y * jax.nn.sigmoid(y)
    out_ref[0] = y.astype(out_ref.dtype)


def _vmem_capacity_bytes():
    try:
        return int(pltpu.get_tpu_info().vmem_capacity_bytes)
    except Exception:
        pass
    try:
        kind = jax.devices()[0].device_kind.lower()
    except Exception:
        kind = ""
    return (64 if ("v7" in kind or "7x" in kind) else 128) * 1024 * 1024


def _tile_footprint_bytes(th, W, C, Cout):
    """Rough per-grid-step VMEM estimate: double-buffered blocks + live values."""
    f32 = 4
    ts = th * W
    in_blk = 2 * C * ts * f32                 # main input block (double buffered)
    halo = 2 * 2 * C * W * f32                # two halo-row blocks (double buffered)
    live = 8 * C * ts * f32                   # x, r_up/r_dn, t_l/t_c/t_r, shifts, acc
    out_blk = 3 * Cout * ts * f32             # out block (x2) + epilogue value
    return in_blk + halo + live + out_blk


def _choose_tile_h(N, H, W, C, Cout, budget_bytes):
    """Largest row tile TH dividing H with a legal lane-dense block
    ((TH*W) % 128 == 0 or TH == H) that fits the per-generation VMEM budget;
    only shrinks if needed to keep >= 2 grid steps for megacore / dual-TC."""
    cands = [th for th in range(1, H + 1)
             if H % th == 0 and (th == H or (th * W) % 128 == 0)]
    cands.sort(reverse=True)
    fitting = [th for th in cands
               if _tile_footprint_bytes(th, W, C, Cout) <= budget_bytes]
    if not fitting:
        # TODO(synk): add a second intra-row (W) tiling axis for very large C*W;
        # fall back to the smallest legal row tile for now.
        return cands[-1]
    th = fitting[0]
    if N * (H // th) < 2:
        multi = [t for t in fitting if N * (H // t) >= 2]
        if multi:
            th = multi[0]
    return th


def separable_conv2d(x_nchw, dw_w, pw_w, pw_b, gamma, beta, run_mean, run_var,
                     eps=1e-3, tile_h=None, matmul_dtype=jnp.bfloat16):
    """x_nchw: (N, C, H, W) float32.  Returns (N, Cout, H, W) float32.

    The pointwise matmul operands use `matmul_dtype` (bf16 MXU by default,
    ~1e-3-level error vs. the f32 reference; pass jnp.float32 for bit-closer
    results).  The depthwise accumulation is always f32.
    """
    N, C, H, W = x_nchw.shape
    Cout = pw_w.shape[0]
    S = H * W

    cap = _vmem_capacity_bytes()
    TH = (_choose_tile_h(N, H, W, C, Cout, budget_bytes=cap // 4)
          if tile_h is None else int(tile_h))
    if H % TH or (TH != H and (TH * W) % 128):
        raise ValueError(f"illegal tile_h={TH} for H={H}, W={W}")
    nH = H // TH
    TS = TH * W

    # Free reshape (NCHW is contiguous): channels -> sublanes, H*W -> lanes.
    x3 = x_nchw.reshape(N, C, S)

    # Halo rows for every tile, gathered once in the wrapper (~x / TH bytes),
    # with explicit zeros at the image border.
    if nH > 1:
        zrow = jnp.zeros((N, 1, C, W), x_nchw.dtype)
        top_rows = jnp.swapaxes(x_nchw[:, :, TH - 1:H - 1:TH, :], 1, 2)  # (N,nH-1,C,W)
        bot_rows = jnp.swapaxes(x_nchw[:, :, TH:H:TH, :], 1, 2)          # (N,nH-1,C,W)
        top_halo = jnp.concatenate([zrow, top_rows], axis=1)             # (N,nH,C,W)
        bot_halo = jnp.concatenate([bot_rows, zrow], axis=1)             # (N,nH,C,W)
    else:
        top_halo = jnp.zeros((N, 1, C, W), x_nchw.dtype)
        bot_halo = jnp.zeros((N, 1, C, W), x_nchw.dtype)

    # Depthwise weights -> (3, 3, C, 1): per-channel scalars on sublanes, ready
    # to broadcast along lanes inside the kernel.
    dw = jnp.transpose(dw_w[:, 0, :, :], (1, 2, 0))[..., None].astype(jnp.float32)

    # Fold BatchNorm(eval) scale into the pointwise weights, and conv bias + BN
    # shift into a single per-channel shift.
    scale = gamma / jnp.sqrt(run_var + eps)                               # (Cout,)
    pw_t = (pw_w[:, :, 0, 0] * scale[:, None]).astype(matmul_dtype)       # (Cout, C)
    shift = (beta + (pw_b - run_mean) * scale).reshape(Cout, 1).astype(jnp.float32)

    kernel = functools.partial(_sepconv_kernel, row_w=W)
    out_flat = pl.pallas_call(
        kernel,
        out_shape=jax.ShapeDtypeStruct((N, Cout, S), jnp.float32),
        grid_spec=pltpu.PrefetchScalarGridSpec(
            num_scalar_prefetch=0,
            grid=(N, nH),
            in_specs=[
                pl.BlockSpec((1, C, TS), lambda n, h: (n, 0, h)),     # main tile
                pl.BlockSpec((1, 1, C, W), lambda n, h: (n, h, 0, 0)),  # top halo
                pl.BlockSpec((1, 1, C, W), lambda n, h: (n, h, 0, 0)),  # bottom halo
                pl.BlockSpec((3, 3, C, 1), lambda n, h: (0, 0, 0, 0)),  # dw weights
                pl.BlockSpec((Cout, C), lambda n, h: (0, 0)),           # pw weights
                pl.BlockSpec((Cout, 1), lambda n, h: (0, 0)),           # shift
            ],
            out_specs=pl.BlockSpec((1, Cout, TS), lambda n, h: (n, 0, h)),
        ),
        compiler_params=pltpu.CompilerParams(
            dimension_semantics=("parallel", "parallel"),
            vmem_limit_bytes=min(cap // 2, 64 * 1024 * 1024)),
    )(x3, top_halo, bot_halo, dw, pw_t, shift)

    # (N, Cout, H*W) is already NCHW-ordered; only a metadata reshape remains.
    return out_flat.reshape(N, Cout, H, W)


def _reference(x_nchw, dw_w, pw_w, pw_b, gamma, beta, run_mean, run_var, eps=1e-3):
    """Pure-JAX reference (same semantics) for verification."""
    N, C, H, W = x_nchw.shape
    x = jnp.transpose(x_nchw, (0, 2, 3, 1))                      # NHWC
    dw_hwio = jnp.transpose(dw_w, (2, 3, 1, 0))                  # (3,3,1,C)
    y = lax.conv_general_dilated(
        x, dw_hwio, window_strides=(1, 1), padding=((1, 1), (1, 1)),
        dimension_numbers=("NHWC", "HWIO", "NHWC"), feature_group_count=C)
    y = jnp.einsum("nhwc,oc->nhwo", y, pw_w[:, :, 0, 0]) + pw_b
    y = (y - run_mean) / jnp.sqrt(run_var + eps) * gamma + beta
    y = y * jax.nn.sigmoid(y)
    return jnp.transpose(y, (0, 3, 1, 2))


if __name__ == "__main__":
    key = jax.random.PRNGKey(0)
    N, C, Cout, H, W = 2, 4, 8, 16, 16

    k = jax.random.split(key, 8)
    x = jax.random.normal(k[0], (N, C, H, W), jnp.float32)
    dw_w = jax.random.normal(k[1], (C, 1, 3, 3), jnp.float32) * 0.2
    pw_w = jax.random.normal(k[2], (Cout, C, 1, 1), jnp.float32) * 0.2
    pw_b = jax.random.normal(k[3], (Cout,), jnp.float32) * 0.1
    gamma = 1.0 + 0.1 * jax.random.normal(k[4], (Cout,), jnp.float32)
    beta = 0.1 * jax.random.normal(k[5], (Cout,), jnp.float32)
    run_mean = 0.1 * jax.random.normal(k[6], (Cout,), jnp.float32)
    run_var = jnp.abs(1.0 + 0.1 * jax.random.normal(k[7], (Cout,), jnp.float32))

    ref = _reference(x, dw_w, pw_w, pw_b, gamma, beta, run_mean, run_var)

    # 1) spatially tiled path: grid=(2, 2), exercises the halo-row handling.
    out_tiled = separable_conv2d(x, dw_w, pw_w, pw_b, gamma, beta, run_mean,
                                 run_var, tile_h=8)
    out_tiled = jax.block_until_ready(out_tiled)
    assert out_tiled.shape == (N, Cout, H, W)
    assert jnp.allclose(out_tiled, ref, rtol=2e-2, atol=2e-2), "tiled mismatch"

    # 2) auto tile selection (whole image per step here): grid=(2, 1).
    out_auto = separable_conv2d(x, dw_w, pw_w, pw_b, gamma, beta, run_mean,
                                run_var)
    out_auto = jax.block_until_ready(out_auto)
    assert jnp.allclose(out_auto, ref, rtol=2e-2, atol=2e-2), "auto mismatch"

    # 3) f32 pointwise-matmul path (documented higher-precision option).
    out_f32 = separable_conv2d(x, dw_w, pw_w, pw_b, gamma, beta, run_mean,
                               run_var, tile_h=8, matmul_dtype=jnp.float32)
    out_f32 = jax.block_until_ready(out_f32)
    assert jnp.allclose(out_f32, ref, rtol=2e-2, atol=2e-2), "f32 mismatch"

    print("KERNEL_OK")
</pallas_src>

<mosaic_0001>
module attributes {stable_mosaic.version = 11 : i64} {
  func.func @_sepconv_kernel(%arg0: i32, %arg1: i32, %arg2: memref<1x4x128xf32, #tpu.memory_space<vmem>>, %arg3: memref<1x1x4x16xf32, #tpu.memory_space<vmem>>, %arg4: memref<1x1x4x16xf32, #tpu.memory_space<vmem>>, %arg5: memref<3x3x4x1xf32, #tpu.memory_space<vmem>>, %arg6: memref<8x4xbf16, #tpu.memory_space<vmem>>, %arg7: memref<8x1xf32, #tpu.memory_space<vmem>>, %arg8: memref<1x8x128xf32, #tpu.memory_space<vmem>>) attributes {dimension_semantics = [#tpu.dimension_semantics<parallel>, #tpu.dimension_semantics<parallel>], iteration_bounds = array<i64: 2, 2>, scalar_prefetch = 0 : i64, scratch_operands = 0 : i64, tpu.core_type = #tpu.core_type<tc>, window_params = [{transform_indices = @transform_0, window_bounds = array<i64: 1, 4, 128>}, {transform_indices = @transform_1, window_bounds = array<i64: 1, 1, 4, 16>}, {transform_indices = @transform_2, window_bounds = array<i64: 1, 1, 4, 16>}, {pipeline_mode = #tpu.pipeline_mode<synchronous>, transform_indices = @transform_3, window_bounds = array<i64: 3, 3, 4, 1>}, {pipeline_mode = #tpu.pipeline_mode<synchronous>, transform_indices = @transform_4, window_bounds = array<i64: 8, 4>}, {pipeline_mode = #tpu.pipeline_mode<synchronous>, transform_indices = @transform_5, window_bounds = array<i64: 8, 1>}, {transform_indices = @transform_6, window_bounds = array<i64: 1, 8, 128>}]} {
    %c0 = arith.constant 0 : index
    %c0_0 = arith.constant 0 : index
    %c0_1 = arith.constant 0 : index
    %0 = vector.load %arg2[%c0, %c0_0, %c0_1] : memref<1x4x128xf32, #tpu.memory_space<vmem>>, vector<1x4x128xf32>
    %1 = vector.shape_cast %0 : vector<1x4x128xf32> to vector<4x128xf32>
    %c0_2 = arith.constant 0 : index
    %c0_3 = arith.constant 0 : index
    %c0_4 = arith.constant 0 : index
    %c0_5 = arith.constant 0 : index
    %2 = vector.load %arg3[%c0_2, %c0_3, %c0_4, %c0_5] : memref<1x1x4x16xf32, #tpu.memory_space<vmem>>, vector<1x1x4x16xf32>
    %3 = vector.shape_cast %2 : vector<1x1x4x16xf32> to vector<4x16xf32>
    %c0_6 = arith.constant 0 : index
    %c0_7 = arith.constant 0 : index
    %c0_8 = arith.constant 0 : index
    %c0_9 = arith.constant 0 : index
    %4 = vector.load %arg4[%c0_6, %c0_7, %c0_8, %c0_9] : memref<1x1x4x16xf32, #tpu.memory_space<vmem>>, vector<1x1x4x16xf32>
    %5 = vector.shape_cast %4 : vector<1x1x4x16xf32> to vector<4x16xf32>
    %6 = vector.extract_strided_slice %1 {offsets = [0, 0], sizes = [4, 112], strides = [1, 1]} : vector<4x128xf32> to vector<4x112xf32>
    %7 = tpu.concatenate %3, %6 in 1 : vector<4x16xf32>, vector<4x112xf32> -> vector<4x128xf32>
    %8 = vector.extract_strided_slice %1 {offsets = [0, 16], sizes = [4, 112], strides = [1, 1]} : vector<4x128xf32> to vector<4x112xf32>
    %9 = tpu.concatenate %8, %5 in 1 : vector<4x112xf32>, vector<4x16xf32> -> vector<4x128xf32>
    %c0_10 = arith.constant 0 : index
    %c0_11 = arith.constant 0 : index
    %c0_12 = arith.constant 0 : index
    %c0_13 = arith.constant 0 : index
    %10 = vector.load %arg5[%c0_10, %c0_11, %c0_12, %c0_13] : memref<3x3x4x1xf32, #tpu.memory_space<vmem>>, vector<3x3x4x1xf32>
    %11 = vector.extract_strided_slice %10 {offsets = [0, 0, 0, 0], sizes = [1, 1, 4, 1], strides = [1, 1, 1, 1]} : vector<3x3x4x1xf32> to vector<1x1x4x1xf32>
    %12 = vector.shape_cast %11 : vector<1x1x4x1xf32> to vector<4x1xf32>
    %13 = vector.broadcast %12 : vector<4x1xf32> to vector<4x128xf32>
    %14 = arith.mulf %7, %13 : vector<4x128xf32>
    %15 = vector.extract_strided_slice %10 {offsets = [1, 0, 0, 0], sizes = [1, 1, 4, 1], strides = [1, 1, 1, 1]} : vector<3x3x4x1xf32> to vector<1x1x4x1xf32>
    %16 = vector.shape_cast %15 : vector<1x1x4x1xf32> to vector<4x1xf32>
    %17 = vector.broadcast %16 : vector<4x1xf32> to vector<4x128xf32>
    %18 = arith.mulf %1, %17 : vector<4x128xf32>
    %19 = arith.addf %14, %18 : vector<4x128xf32>
    %20 = vector.extract_strided_slice %10 {offsets = [2, 0, 0, 0], sizes = [1, 1, 4, 1], strides = [1, 1, 1, 1]} : vector<3x3x4x1xf32> to vector<1x1x4x1xf32>
    %21 = vector.shape_cast %20 : vector<1x1x4x1xf32> to vector<4x1xf32>
    %22 = vector.broadcast %21 : vector<4x1xf32> to vector<4x128xf32>
    %23 = arith.mulf %9, %22 : vector<4x128xf32>
    %24 = arith.addf %19, %23 : vector<4x128xf32>
    %25 = vector.extract_strided_slice %10 {offsets = [0, 1, 0, 0], sizes = [1, 1, 4, 1], strides = [1, 1, 1, 1]} : vector<3x3x4x1xf32> to vector<1x1x4x1xf32>
    %26 = vector.shape_cast %25 : vector<1x1x4x1xf32> to vector<4x1xf32>
    %27 = vector.broadcast %26 : vector<4x1xf32> to vector<4x128xf32>
    %28 = arith.mulf %7, %27 : vector<4x128xf32>
    %29 = vector.extract_strided_slice %10 {offsets = [1, 1, 0, 0], sizes = [1, 1, 4, 1], strides = [1, 1, 1, 1]} : vector<3x3x4x1xf32> to vector<1x1x4x1xf32>
    %30 = vector.shape_cast %29 : vector<1x1x4x1xf32> to vector<4x1xf32>
    %31 = vector.broadcast %30 : vector<4x1xf32> to vector<4x128xf32>
    %32 = arith.mulf %1, %31 : vector<4x128xf32>
    %33 = arith.addf %28, %32 : vector<4x128xf32>
    %34 = vector.extract_strided_slice %10 {offsets = [2, 1, 0, 0], sizes = [1, 1, 4, 1], strides = [1, 1, 1, 1]} : vector<3x3x4x1xf32> to vector<1x1x4x1xf32>
    %35 = vector.shape_cast %34 : vector<1x1x4x1xf32> to vector<4x1xf32>
    %36 = vector.broadcast %35 : vector<4x1xf32> to vector<4x128xf32>
    %37 = arith.mulf %9, %36 : vector<4x128xf32>
    %38 = arith.addf %33, %37 : vector<4x128xf32>
    %39 = vector.extract_strided_slice %10 {offsets = [0, 2, 0, 0], sizes = [1, 1, 4, 1], strides = [1, 1, 1, 1]} : vector<3x3x4x1xf32> to vector<1x1x4x1xf32>
    %40 = vector.shape_cast %39 : vector<1x1x4x1xf32> to vector<4x1xf32>
    %41 = vector.broadcast %40 : vector<4x1xf32> to vector<4x128xf32>
    %42 = arith.mulf %7, %41 : vector<4x128xf32>
    %43 = vector.extract_strided_slice %10 {offsets = [1, 2, 0, 0], sizes = [1, 1, 4, 1], strides = [1, 1, 1, 1]} : vector<3x3x4x1xf32> to vector<1x1x4x1xf32>
    %44 = vector.shape_cast %43 : vector<1x1x4x1xf32> to vector<4x1xf32>
    %45 = vector.broadcast %44 : vector<4x1xf32> to vector<4x128xf32>
    %46 = arith.mulf %1, %45 : vector<4x128xf32>
    %47 = arith.addf %42, %46 : vector<4x128xf32>
    %48 = vector.extract_strided_slice %10 {offsets = [2, 2, 0, 0], sizes = [1, 1, 4, 1], strides = [1, 1, 1, 1]} : vector<3x3x4x1xf32> to vector<1x1x4x1xf32>
    %49 = vector.shape_cast %48 : vector<1x1x4x1xf32> to vector<4x1xf32>
    %50 = vector.broadcast %49 : vector<4x1xf32> to vector<4x128xf32>
    %51 = arith.mulf %9, %50 : vector<4x128xf32>
    %52 = arith.addf %47, %51 : vector<4x128xf32>
    %53 = tpu.iota {dimensions = array<i32: 1>} : vector<1x128xi32>
    %c16_i32 = arith.constant 16 : i32
    %c0_i32 = arith.constant 0 : i32
    %54 = arith.cmpi eq, %c16_i32, %c0_i32 : i32
    %c1_i32 = arith.constant 1 : i32
    %55 = arith.select %54, %c1_i32, %c16_i32 : i32
    %56 = vector.broadcast %55 : i32 to vector<1x128xi32>
    %57 = arith.remsi %53, %56 : vector<1x128xi32>
    %c0_i32_14 = arith.constant 0 : i32
    %58 = vector.broadcast %c0_i32_14 : i32 to vector<1x128xi32>
    %59 = arith.cmpi ne, %57, %58 : vector<1x128xi32>
    %c0_i32_15 = arith.constant 0 : i32
    %60 = vector.broadcast %c0_i32_15 : i32 to vector<1x128xi32>
    %61 = arith.cmpi slt, %57, %60 : vector<1x128xi32>
    %c0_i32_16 = arith.constant 0 : i32
    %62 = arith.cmpi slt, %55, %c0_i32_16 : i32
    %63 = vector.broadcast %62 : i1 to vector<1x128xi1>
    %64 = vector.broadcast %63 : vector<1x128xi1> to vector<1x128xi1>
    %65 = arith.xori %61, %64 : vector<1x128xi1>
    %66 = arith.andi %65, %59 : vector<1x128xi1>
    %67 = vector.broadcast %55 : i32 to vector<1x128xi32>
    %68 = arith.addi %57, %67 : vector<1x128xi32>
    %69 = arith.select %66, %68, %57 : vector<1x128xi1>, vector<1x128xi32>
    %70 = vector.extract_strided_slice %24 {offsets = [0, 0], sizes = [4, 1], strides = [1, 1]} : vector<4x128xf32> to vector<4x1xf32>
    %71 = vector.extract_strided_slice %24 {offsets = [0, 0], sizes = [4, 127], strides = [1, 1]} : vector<4x128xf32> to vector<4x127xf32>
    %72 = tpu.concatenate %70, %71 in 1 : vector<4x1xf32>, vector<4x127xf32> -> vector<4x128xf32>
    %73 = vector.extract_strided_slice %52 {offsets = [0, 1], sizes = [4, 127], strides = [1, 1]} : vector<4x128xf32> to vector<4x127xf32>
    %74 = vector.extract_strided_slice %52 {offsets = [0, 127], sizes = [4, 1], strides = [1, 1]} : vector<4x128xf32> to vector<4x1xf32>
    %75 = tpu.concatenate %73, %74 in 1 : vector<4x127xf32>, vector<4x1xf32> -> vector<4x128xf32>
    %c0_i32_17 = arith.constant 0 : i32
    %76 = vector.broadcast %c0_i32_17 : i32 to vector<1x128xi32>
    %77 = arith.cmpi eq, %69, %76 : vector<1x128xi32>
    %cst = arith.constant 0.000000e+00 : f32
    %78 = vector.shape_cast %77 : vector<1x128xi1> to vector<1x128xi1>
    %79 = vector.broadcast %78 : vector<1x128xi1> to vector<4x128xi1>
    %80 = vector.broadcast %cst : f32 to vector<4x128xf32>
    %81 = arith.select %79, %80, %72 : vector<4x128xi1>, vector<4x128xf32>
    %82 = arith.addf %38, %81 : vector<4x128xf32>
    %c15_i32 = arith.constant 15 : i32
    %83 = vector.broadcast %c15_i32 : i32 to vector<1x128xi32>
    %84 = arith.cmpi eq, %69, %83 : vector<1x128xi32>
    %cst_18 = arith.constant 0.000000e+00 : f32
    %85 = vector.shape_cast %84 : vector<1x128xi1> to vector<1x128xi1>
    %86 = vector.broadcast %85 : vector<1x128xi1> to vector<4x128xi1>
    %87 = vector.broadcast %cst_18 : f32 to vector<4x128xf32>
    %88 = arith.select %86, %87, %75 : vector<4x128xi1>, vector<4x128xf32>
    %89 = arith.addf %82, %88 : vector<4x128xf32>
    %c0_19 = arith.constant 0 : index
    %c0_20 = arith.constant 0 : index
    %90 = vector.load %arg6[%c0_19, %c0_20] : memref<8x4xbf16, #tpu.memory_space<vmem>>, vector<8x4xbf16>
    %91 = arith.truncf %89 : vector<4x128xf32> to vector<4x128xbf16>
    %cst_21 = arith.constant dense<0.000000e+00> : vector<8x128xf32>
    %92 = tpu.matmul %90, %91, %cst_21 {dimension_numbers = #tpu.dot_dimension_numbers<[1], [0], [0], [1], [0, 0, 1, 1], [], []>} : vector<8x4xbf16>, vector<4x128xbf16>, vector<8x128xf32> -> vector<8x128xf32>
    %c0_22 = arith.constant 0 : index
    %c0_23 = arith.constant 0 : index
    %93 = vector.load %arg7[%c0_22, %c0_23] : memref<8x1xf32, #tpu.memory_space<vmem>>, vector<8x1xf32>
    %94 = vector.broadcast %93 : vector<8x1xf32> to vector<8x128xf32>
    %95 = arith.addf %92, %94 : vector<8x128xf32>
    %96 = arith.negf %95 : vector<8x128xf32>
    %97 = math.exp %96 : vector<8x128xf32>
    %cst_24 = arith.constant 1.000000e+00 : f32
    %98 = vector.broadcast %cst_24 : f32 to vector<8x128xf32>
    %99 = arith.addf %98, %97 : vector<8x128xf32>
    %100 = arith.divf %98, %99 : vector<8x128xf32>
    %101 = arith.mulf %95, %100 : vector<8x128xf32>
    %c0_25 = arith.constant 0 : index
    %c0_26 = arith.constant 0 : index
    %c0_27 = arith.constant 0 : index
    %102 = vector.load %arg8[%c0_25, %c0_26, %c0_27] : memref<1x8x128xf32, #tpu.memory_space<vmem>>, vector<1x8x128xf32>
    %103 = vector.shape_cast %102 : vector<1x8x128xf32> to vector<8x128xf32>
    %104 = vector.shape_cast %101 : vector<8x128xf32> to vector<1x8x128xf32>
    tpu.vector_store %arg8[%c0_25, %c0_26, %c0_27], %104 {strides = array<i32>} : memref<1x8x128xf32, #tpu.memory_space<vmem>>, vector<1x8x128xf32>,
    return
  }
  func.func @transform_0(%arg0: i32, %arg1: i32) -> (i32, i32, i32) {
    %c0_i32 = arith.constant 0 : i32
    %c0_i32_0 = arith.constant 0 : i32
    return %arg0, %c0_i32, %arg1 : i32, i32, i32
  }
  func.func @transform_1(%arg0: i32, %arg1: i32) -> (i32, i32, i32, i32) {
    %c0_i32 = arith.constant 0 : i32
    %c0_i32_0 = arith.constant 0 : i32
    %c0_i32_1 = arith.constant 0 : i32
    return %arg0, %arg1, %c0_i32, %c0_i32_0 : i32, i32, i32, i32
  }
  func.func @transform_2(%arg0: i32, %arg1: i32) -> (i32, i32, i32, i32) {
    %c0_i32 = arith.constant 0 : i32
    %c0_i32_0 = arith.constant 0 : i32
    %c0_i32_1 = arith.constant 0 : i32
    return %arg0, %arg1, %c0_i32, %c0_i32_0 : i32, i32, i32, i32
  }
  func.func @transform_3(%arg0: i32, %arg1: i32) -> (i32, i32, i32, i32) {
    %c0_i32 = arith.constant 0 : i32
    %c0_i32_0 = arith.constant 0 : i32
    %c0_i32_1 = arith.constant 0 : i32
    %c0_i32_2 = arith.constant 0 : i32
    %c0_i32_3 = arith.constant 0 : i32
    return %c0_i32, %c0_i32_0, %c0_i32_1, %c0_i32_2 : i32, i32, i32, i32
  }
  func.func @transform_4(%arg0: i32, %arg1: i32) -> (i32, i32) {
    %c0_i32 = arith.constant 0 : i32
    %c0_i32_0 = arith.constant 0 : i32
    %c0_i32_1 = arith.constant 0 : i32
    return %c0_i32, %c0_i32_0 : i32, i32
  }
  func.func @transform_5(%arg0: i32, %arg1: i32) -> (i32, i32) {
    %c0_i32 = arith.constant 0 : i32
    %c0_i32_0 = arith.constant 0 : i32
    %c0_i32_1 = arith.constant 0 : i32
    return %c0_i32, %c0_i32_0 : i32, i32
  }
  func.func @transform_6(%arg0: i32, %arg1: i32) -> (i32, i32, i32) {
    %c0_i32 = arith.constant 0 : i32
    %c0_i32_0 = arith.constant 0 : i32
    return %arg0, %c0_i32, %arg1 : i32, i32, i32
  }
}

</mosaic_0001>

<llo_original>
// kernel: tpu_custom_call.1
$region0: #{tpu_custom_call.1}
  #allocation0 [shape = 'u32[]', space=smem, size = 0x4, offset = 0x4, fixed_abs, tag = 'smem constant byte address 0x4 - core index']
  #allocation1 [shape = 'u32[72,128]{1,0:T(1,128)}', space=vmem, size = 0x9000, scoped, tag = 'internal scratch']
  %s0 = inlined_call_operand.vmem [shape: f32[2,4,256], index: 0, kind: input, shape index: {}]
  %s1 = inlined_call_operand.vmem [shape: f32[2,2,4,16], index: 1, kind: input, shape index: {}]
  %s2 = inlined_call_operand.vmem [shape: f32[2,2,4,16], index: 2, kind: input, shape index: {}]
  %s3 = inlined_call_operand.vmem [shape: f32[3,3,4,1], index: 3, kind: input, shape index: {}]
  %s4 = inlined_call_operand.vmem [shape: bf16[8,4], index: 4, kind: input, shape index: {}]
  %s5 = inlined_call_operand.vmem [shape: f32[8,1], index: 5, kind: input, shape index: {}]
  %s6 = inlined_call_operand.hbm [shape: f32[2,8,256], index: 6, kind: output, shape index: {}]
  %s7 = sld [smem:[#allocation0]]
  $region57: #{tpu_custom_call.1} parent=0
    _
  %s9 = ssub.s32 1, %s7
  %s10 = scalar_select 0, %s9, %s7
  $region1: #{tpu_custom_call.1} parent=0
    #allocation2 [shape = 'u8[8192]{0}', space=vmem, size = 0x2000, scoped, tag = 'output window, operand 0']
    #allocation3 [shape = 's32[2]{0}', space=sflag, size = 0x8, scoped, tag = 'scoped memory for tpu_custom_call.1']
    %11 = vsyncpa [#allocation3], 0
    %s12 = scalar_lea.sflag [#allocation3], 1
    %13 = vsyncpa %s12, 0
    loop: start=0, step=1, limit=6
    $region2: #{tpu_custom_call.1} parent=1 // loop_pre_header
      _
    $region3: #{tpu_custom_call.1} parent=1 // loop_header
      %s15 = sphi 0, %s19
      %p16 = scmp.ge.s32.totalorder %s15, 6
      %s22 = sphi 0, %s34
      %s23 = sphi 0, %s30
      %s24 = sphi 0, %s22
      %s25 = sphi 0, %s23
      %s26 = sphi 0, %s24
      %s27 = sphi 0, %s25
      %s39 = sphi 0, %s41
      %s42 = sphi 0, %s39
      %s43 = sphi 0, %s42
      %s59 = sphi 0, %s43
      %s67 = sphi 0, %s69
      %s70 = sphi 0, %s67
      %s71 = sphi 0, %s70
      %s87 = sphi 0, %s71
      %s95 = sphi 0, %s97
      %s98 = sphi 0, %s95
      %s99 = sphi 0, %s98
      %s115 = sphi 0, %s99
      %s119 = sphi 0, %s119
      %s121 = sphi 0, %s119
      %s122 = sphi 0, %s121
      %s136 = sphi 0, %s122
      %s140 = sphi 0, %s140
      %s142 = sphi 0, %s140
      %s143 = sphi 0, %s142
      %s157 = sphi 0, %s143
      %s161 = sphi 0, %s161
      %s163 = sphi 0, %s161
      %s164 = sphi 0, %s163
      %s178 = sphi 0, %s164
      %s186 = sphi 0, %s188
      %s189 = sphi 0, %s186
      %s190 = sphi 0, %s189
      %s206 = sphi 0, %s190
    $region4: #{tpu_custom_call.1} parent=1 // loop_header_branch
      %18 = sbr.rel (%p16) target = $region8
    $region5: #{tpu_custom_call.1} parent=1 // loop_body
      %s20 = ssub.s32 %s15, 1
      %s21 = ssub.s32 %s15, 2
      %s28 = sadd.s32 1, %s23
      %p29 = scmp.ge.s32.totalorder %s28, 2
      %s30 = scalar_select %p29, 0, %s28
      %s31 = sadd.s32 1, %s22
      %s32 = scalar_select %p29, %s31, %s22
      %p33 = scmp.ge.s32.totalorder %s32, 2
      %s34 = scalar_select %p33, 0, %s32
      %s35 = ssub.s32 %s22, %s34
      %s36 = ssub.s32 %s23, %s30
      %s37 = sor.u32 %s35, %s36
      %p38 = scmp.eq.s32.totalorder %s37, 0
      %s40 = sadd.s32 %s39, 1
      %s41 = scalar_select %p38, %s39, %s40
      %p44 = pneg %p38
      %p45 = scmp.eq.s32.totalorder %s15, 3
      %p46 = por %p44, %p45
      %p47 = scmp.ne.s32.totalorder %s39, %s42
      %p48 = scmp.eq.s32.totalorder %s15, 0
      %p49 = por %p47, %p48
      %p50 = scmp.ne.s32.totalorder %s39, %s42
      %p51 = scmp.eq.s32.totalorder %s20, 3
      %p52 = por %p50, %p51
      %p53 = scmp.ne.s32.totalorder %s42, %s43
      %p54 = scmp.eq.s32.totalorder %s20, 0
      %p55 = por %p53, %p54
      %p56 = scmp.ne.s32.totalorder %s42, %s43
      %p57 = scmp.eq.s32.totalorder %s21, 3
      %p58 = por %p56, %p57
      %p60 = scmp.ne.s32.totalorder %s43, %s59
      %p61 = scmp.eq.s32.totalorder %s21, 0
      %p62 = por %p60, %p61
      %s63 = ssub.s32 %s22, %s34
      %s64 = ssub.s32 %s23, %s30
      %s65 = sor.u32 %s63, %s64
      %p66 = scmp.eq.s32.totalorder %s65, 0
      %s68 = sadd.s32 %s67, 1
      %s69 = scalar_select %p66, %s67, %s68
      %p72 = pneg %p66
      %p73 = scmp.eq.s32.totalorder %s15, 3
      %p74 = por %p72, %p73
      %p75 = scmp.ne.s32.totalorder %s67, %s70
      %p76 = scmp.eq.s32.totalorder %s15, 0
      %p77 = por %p75, %p76
      %p78 = scmp.ne.s32.totalorder %s67, %s70
      %p79 = scmp.eq.s32.totalorder %s20, 3
      %p80 = por %p78, %p79
      %p81 = scmp.ne.s32.totalorder %s70, %s71
      %p82 = scmp.eq.s32.totalorder %s20, 0
      %p83 = por %p81, %p82
      %p84 = scmp.ne.s32.totalorder %s70, %s71
      %p85 = scmp.eq.s32.totalorder %s21, 3
      %p86 = por %p84, %p85
      %p88 = scmp.ne.s32.totalorder %s71, %s87
      %p89 = scmp.eq.s32.totalorder %s21, 0
      %p90 = por %p88, %p89
      %s91 = ssub.s32 %s22, %s34
      %s92 = ssub.s32 %s23, %s30
      %s93 = sor.u32 %s91, %s92
      %p94 = scmp.eq.s32.totalorder %s93, 0
      %s96 = sadd.s32 %s95, 1
      %s97 = scalar_select %p94, %s95, %s96
      %p100 = pneg %p94
      %p101 = scmp.eq.s32.totalorder %s15, 3
      %p102 = por %p100, %p101
      %p103 = scmp.ne.s32.totalorder %s95, %s98
      %p104 = scmp.eq.s32.totalorder %s15, 0
      %p105 = por %p103, %p104
      %p106 = scmp.ne.s32.totalorder %s95, %s98
      %p107 = scmp.eq.s32.totalorder %s20, 3
      %p108 = por %p106, %p107
      %p109 = scmp.ne.s32.totalorder %s98, %s99
      %p110 = scmp.eq.s32.totalorder %s20, 0
      %p111 = por %p109, %p110
      %p112 = scmp.ne.s32.totalorder %s98, %s99
      %p113 = scmp.eq.s32.totalorder %s21, 3
      %p114 = por %p112, %p113
      %p116 = scmp.ne.s32.totalorder %s99, %s115
      %p117 = scmp.eq.s32.totalorder %s21, 0
      %p118 = por %p116, %p117
      %s120 = sadd.s32 %s119, 1
      %p123 = scmp.eq.s32.totalorder %s15, 3
      %p124 = scmp.ne.s32.totalorder %s119, %s121
      %p125 = scmp.eq.s32.totalorder %s15, 0
      %p126 = por %p124, %p125
      %p127 = scmp.ne.s32.totalorder %s119, %s121
      %p128 = scmp.eq.s32.totalorder %s20, 3
      %p129 = por %p127, %p128
      %p130 = scmp.ne.s32.totalorder %s121, %s122
      %p131 = scmp.eq.s32.totalorder %s20, 0
      %p132 = por %p130, %p131
      %p133 = scmp.ne.s32.totalorder %s121, %s122
      %p134 = scmp.eq.s32.totalorder %s21, 3
      %p135 = por %p133, %p134
      %p137 = scmp.ne.s32.totalorder %s122, %s136
      %p138 = scmp.eq.s32.totalorder %s21, 0
      %p139 = por %p137, %p138
      %s141 = sadd.s32 %s140, 1
      %p144 = scmp.eq.s32.totalorder %s15, 3
      %p145 = scmp.ne.s32.totalorder %s140, %s142
      %p146 = scmp.eq.s32.totalorder %s15, 0
      %p147 = por %p145, %p146
      %p148 = scmp.ne.s32.totalorder %s140, %s142
      %p149 = scmp.eq.s32.totalorder %s20, 3
      %p150 = por %p148, %p149
      %p151 = scmp.ne.s32.totalorder %s142, %s143
      %p152 = scmp.eq.s32.totalorder %s20, 0
      %p153 = por %p151, %p152
      %p154 = scmp.ne.s32.totalorder %s142, %s143
      %p155 = scmp.eq.s32.totalorder %s21, 3
      %p156 = por %p154, %p155
      %p158 = scmp.ne.s32.totalorder %s143, %s157
      %p159 = scmp.eq.s32.totalorder %s21, 0
      %p160 = por %p158, %p159
      %s162 = sadd.s32 %s161, 1
      %p165 = scmp.eq.s32.totalorder %s15, 3
      %p166 = scmp.ne.s32.totalorder %s161, %s163
      %p167 = scmp.eq.s32.totalorder %s15, 0
      %p168 = por %p166, %p167
      %p169 = scmp.ne.s32.totalorder %s161, %s163
      %p170 = scmp.eq.s32.totalorder %s20, 3
      %p171 = por %p169, %p170
      %p172 = scmp.ne.s32.totalorder %s163, %s164
      %p173 = scmp.eq.s32.totalorder %s20, 0
      %p174 = por %p172, %p173
      %p175 = scmp.ne.s32.totalorder %s163, %s164
      %p176 = scmp.eq.s32.totalorder %s21, 3
      %p177 = por %p175, %p176
      %p179 = scmp.ne.s32.totalorder %s164, %s178
      %p180 = scmp.eq.s32.totalorder %s21, 0
      %p181 = por %p179, %p180
      %s182 = ssub.s32 %s22, %s34
      %s183 = ssub.s32 %s23, %s30
      %s184 = sor.u32 %s182, %s183
      %p185 = scmp.eq.s32.totalorder %s184, 0
      %s187 = sadd.s32 %s186, 1
      %s188 = scalar_select %p185, %s186, %s187
      %p191 = pneg %p185
      %p192 = scmp.eq.s32.totalorder %s15, 3
      %p193 = por %p191, %p192
      %p194 = scmp.ne.s32.totalorder %s186, %s189
      %p195 = scmp.eq.s32.totalorder %s15, 0
      %p196 = por %p194, %p195
      %p197 = scmp.ne.s32.totalorder %s186, %s189
      %p198 = scmp.eq.s32.totalorder %s20, 3
      %p199 = por %p197, %p198
      %p200 = scmp.ne.s32.totalorder %s189, %s190
      %p201 = scmp.eq.s32.totalorder %s20, 0
      %p202 = por %p200, %p201
      %p203 = scmp.ne.s32.totalorder %s189, %s190
      %p204 = scmp.eq.s32.totalorder %s21, 3
      %p205 = por %p203, %p204
      %p207 = scmp.ne.s32.totalorder %s190, %s206
      %p208 = scmp.eq.s32.totalorder %s21, 0
      %p209 = por %p207, %p208
      %p210 = scmp.le.s32.totalorder 1, %s15
      %p211 = scmp.lt.s32.totalorder %s15, 5
      %p212 = pnand %p210, %p211
      %p213 = pneg %p212
      // Predicated region
      $region9: #{tpu_custom_call.1} parent=5 // pred_check
        _
      $region10: #{tpu_custom_call.1} parent=5 // pred_check_branch
        %215 = sbr.rel (%p212) target = $region12
      $region11: #{tpu_custom_call.1} parent=5 // pred_region
        %s216 = ssub.s32 %s15, 1
        // Predicated region
        $region13: #{tpu_custom_call.1} parent=11 // pred_check
          %p217 = pneg %p132
        $region14: #{tpu_custom_call.1} parent=11 // pred_check_branch
          %219 = sbr.rel (%p217) target = $region16
        $region15: #{tpu_custom_call.1} parent=11 // pred_region
          _
        $region16: #{tpu_custom_call.1} parent=11 // pred_fallthru
          _
        // Predicated region
        $region17: #{tpu_custom_call.1} parent=11 // pred_check
          %p220 = pneg %p153
        $region18: #{tpu_custom_call.1} parent=11 // pred_check_branch
          %222 = sbr.rel (%p220) target = $region20
        $region19: #{tpu_custom_call.1} parent=11 // pred_region
          _
        $region20: #{tpu_custom_call.1} parent=11 // pred_fallthru
          _
        // Predicated region
        $region21: #{tpu_custom_call.1} parent=11 // pred_check
          %p223 = pneg %p174
        $region22: #{tpu_custom_call.1} parent=11 // pred_check_branch
          %225 = sbr.rel (%p223) target = $region24
        $region23: #{tpu_custom_call.1} parent=11 // pred_region
          _
        $region24: #{tpu_custom_call.1} parent=11 // pred_fallthru
          _
      $region12: #{tpu_custom_call.1} parent=5 // pred_fallthru
        _
      %p226 = scmp.lt.s32.totalorder %s15, 4
      // Predicated region
      $region25: #{tpu_custom_call.1} parent=5 // pred_check
        %p227 = pneg %p226
      $region26: #{tpu_custom_call.1} parent=5 // pred_check_branch
        %229 = sbr.rel (%p227) target = $region28
      $region27: #{tpu_custom_call.1} parent=5 // pred_region
        // Predicated region
        $region29: #{tpu_custom_call.1} parent=27 // pred_check
          %p230 = pneg %p49
        $region30: #{tpu_custom_call.1} parent=27 // pred_check_branch
          %232 = sbr.rel (%p230) target = $region32
        $region31: #{tpu_custom_call.1} parent=27 // pred_region
          %p233 = scmp.lt.s32.totalorder %s22, 1
          %s234 = scalar_select %p233, %s22, 1
          %p235 = scmp.lt.s32.totalorder %s23, 1
          %s236 = scalar_select %p235, %s23, 1
          %s237 = smul.addr %s234, 2
          %s238 = sadd.s32 %s236, %s237
          %s239 = smul.addr %s238, 4
          %s240 = scalar_lea.vmem %s0, %s239
        $region32: #{tpu_custom_call.1} parent=27 // pred_fallthru
          _
        // Predicated region
        $region33: #{tpu_custom_call.1} parent=27 // pred_check
          %p241 = pneg %p77
        $region34: #{tpu_custom_call.1} parent=27 // pred_check_branch
          %243 = sbr.rel (%p241) target = $region36
        $region35: #{tpu_custom_call.1} parent=27 // pred_region
          %p244 = scmp.lt.s32.totalorder %s22, 1
          %s245 = scalar_select %p244, %s22, 1
          %p246 = scmp.lt.s32.totalorder %s23, 1
          %s247 = scalar_select %p246, %s23, 1
          %s248 = smul.addr %s245, 2
          %s249 = sadd.s32 %s247, %s248
          %s250 = smul.addr %s249, 4
          %s251 = scalar_lea.vmem %s1, %s250
        $region36: #{tpu_custom_call.1} parent=27 // pred_fallthru
          _
        // Predicated region
        $region37: #{tpu_custom_call.1} parent=27 // pred_check
          %p252 = pneg %p105
        $region38: #{tpu_custom_call.1} parent=27 // pred_check_branch
          %254 = sbr.rel (%p252) target = $region40
        $region39: #{tpu_custom_call.1} parent=27 // pred_region
          %p255 = scmp.lt.s32.totalorder %s22, 1
          %s256 = scalar_select %p255, %s22, 1
          %p257 = scmp.lt.s32.totalorder %s23, 1
          %s258 = scalar_select %p257, %s23, 1
          %s259 = smul.addr %s256, 2
          %s260 = sadd.s32 %s258, %s259
          %s261 = smul.addr %s260, 4
          %s262 = scalar_lea.vmem %s2, %s261
        $region40: #{tpu_custom_call.1} parent=27 // pred_fallthru
          _
      $region28: #{tpu_custom_call.1} parent=5 // pred_fallthru
        _
      %p263 = scmp.le.s32.totalorder 1, %s15
      %p264 = scmp.lt.s32.totalorder %s15, 5
      %p265 = pnand %p263, %p264
      %p266 = pneg %p265
      // Predicated region
      $region41: #{tpu_custom_call.1} parent=5 // pred_check
        _
      $region42: #{tpu_custom_call.1} parent=5 // pred_check_branch
        %268 = sbr.rel (%p265) target = $region44
      $region43: #{tpu_custom_call.1} parent=5 // pred_region
        %s269 = ssub.s32 %s15, 1
        %p270 = scmp.lt.s32.totalorder %s24, 1
        %s271 = scalar_select %p270, %s24, 1
        %p272 = scmp.lt.s32.totalorder %s25, 1
        %s273 = scalar_select %p272, %s25, 1
        %s274 = smul.addr %s271, 2
        %s275 = sadd.s32 %s273, %s274
        %s276 = smul.addr %s275, 4
        %s277 = scalar_lea.vmem %s0, %s276
        %p278 = pneg %p55
        %p279 = pneg %p52
        %p280 = scmp.lt.s32.totalorder %s24, 1
        %s281 = scalar_select %p280, %s24, 1
        %p282 = scmp.lt.s32.totalorder %s25, 1
        %s283 = scalar_select %p282, %s25, 1
        %s284 = smul.addr %s281, 2
        %s285 = sadd.s32 %s283, %s284
        %s286 = smul.addr %s285, 4
        %s287 = scalar_lea.vmem %s1, %s286
        %p288 = pneg %p83
        %p289 = pneg %p80
        %p290 = scmp.lt.s32.totalorder %s24, 1
        %s291 = scalar_select %p290, %s24, 1
        %p292 = scmp.lt.s32.totalorder %s25, 1
        %s293 = scalar_select %p292, %s25, 1
        %s294 = smul.addr %s291, 2
        %s295 = sadd.s32 %s293, %s294
        %s296 = smul.addr %s295, 4
        %s297 = scalar_lea.vmem %s2, %s296
        %p298 = pneg %p111
        %p299 = pneg %p108
        %p300 = pneg %p132
        %p301 = pneg %p129
        %p302 = pneg %p153
        %p303 = pneg %p150
        %p304 = pneg %p174
        %p305 = pneg %p171
        %p306 = pneg %p202
        %p307 = pneg %p199
        %s308 = sand.u32 %s189, 1
        %s309 = scalar_lea.sflag [#allocation3], %s308
        %s310 = sand.u32 %s189, 1
        %s311 = smul.addr %s310, 8
        %s312 = scalar_lea.vmem [#allocation2], %s311
        %p313 = scmp.lt.s32.totalorder %s24, 1
        %s314 = scalar_select %p313, %s24, 1
        %p315 = scmp.lt.s32.totalorder %s25, 1
        %s316 = scalar_select %p315, %s25, 1
        %s317 = smul.addr %s314, 2
        %s318 = sadd.s32 %s316, %s317
        %s319 = smul.addr %s318, 4
        %s320 = scalar_lea.vmem %s0, %s319
        %p321 = scmp.lt.s32.totalorder %s24, 1
        %s322 = scalar_select %p321, %s24, 1
        %p323 = scmp.lt.s32.totalorder %s25, 1
        %s324 = scalar_select %p323, %s25, 1
        %s325 = smul.addr %s322, 2
        %s326 = sadd.s32 %s324, %s325
        %s327 = smul.addr %s326, 4
        %s328 = scalar_lea.vmem %s1, %s327
        %p329 = scmp.lt.s32.totalorder %s24, 1
        %s330 = scalar_select %p329, %s24, 1
        %p331 = scmp.lt.s32.totalorder %s25, 1
        %s332 = scalar_select %p331, %s25, 1
        %s333 = smul.addr %s330, 2
        %s334 = sadd.s32 %s332, %s333
        %s335 = smul.addr %s334, 4
        %s336 = scalar_lea.vmem %s2, %s335
        %v338 = vld [vmem:[%s320] sm:$0xf]
        %v339 = vld [vmem:[%s328] sm:$0xf]
        %v340 = vld [vmem:[%s336] sm:$0xf]
        %342 = vrot.lane.b32.xlu0 %v338, 16
        %v343 = vpop.permute.xlu0 %342
        %vm345 = vcmask 130048
        %v346 = vsel %vm345, %v339, %v343
        %347 = vrot.lane.b32.xlu0 %v338, 112
        %v348 = vpop.permute.xlu0 %347
        %351 = vrot.lane.b32.xlu0 %v340, 112
        %v352 = vpop.permute.xlu0 %351
        %vm354 = vcmask 916480
        %v355 = vsel %vm354, %v348, %v352
        %v356 = vld [vmem:[%s3] sm:$0xf]
        %v357 = vld [vmem:[%s3 + $0x4] sm:$0xf]
        %v358 = vld [vmem:[%s3 + $0x8] sm:$0xf]
        %v359 = vld [vmem:[%s3 + $0xc] sm:$0xf]
        %v360 = vld [vmem:[%s3 + $0x10] sm:$0xf]
        %v361 = vld [vmem:[%s3 + $0x14] sm:$0xf]
        %v362 = vld [vmem:[%s3 + $0x18] sm:$0xf]
        %v363 = vld [vmem:[%s3 + $0x1c] sm:$0xf]
        %v364 = vld [vmem:[%s3 + $0x20] sm:$0xf]
        %366 = vset.pattern.permute.xlu0 0
        %367 = vperm.xlu0 %366, %v356
        %v368 = vpop.permute.xlu0 %367
        %v370 = vmul.f32 %v346, %v368
        %372 = vset.pattern.permute.xlu0 0
        %373 = vperm.xlu0 %372, %v359
        %v374 = vpop.permute.xlu0 %373
        %v376 = vmul.f32 %v338, %v374
        %v377 = vadd.f32 %v370, %v376
        %379 = vset.pattern.permute.xlu0 0
        %380 = vperm.xlu0 %379, %v362
        %v381 = vpop.permute.xlu0 %380
        %v383 = vmul.f32 %v355, %v381
        %v384 = vadd.f32 %v377, %v383
        %386 = vset.pattern.permute.xlu0 0
        %387 = vperm.xlu0 %386, %v357
        %v388 = vpop.permute.xlu0 %387
        %v390 = vmul.f32 %v346, %v388
        %392 = vset.pattern.permute.xlu0 0
        %393 = vperm.xlu0 %392, %v360
        %v394 = vpop.permute.xlu0 %393
        %v396 = vmul.f32 %v338, %v394
        %v397 = vadd.f32 %v390, %v396
        %399 = vset.pattern.permute.xlu0 0
        %400 = vperm.xlu0 %399, %v363
        %v401 = vpop.permute.xlu0 %400
        %v403 = vmul.f32 %v355, %v401
        %v404 = vadd.f32 %v397, %v403
        %406 = vset.pattern.permute.xlu0 0
        %407 = vperm.xlu0 %406, %v358
        %v408 = vpop.permute.xlu0 %407
        %v410 = vmul.f32 %v346, %v408
        %412 = vset.pattern.permute.xlu0 0
        %413 = vperm.xlu0 %412, %v361
        %v414 = vpop.permute.xlu0 %413
        %v416 = vmul.f32 %v338, %v414
        %v417 = vadd.f32 %v410, %v416
        %419 = vset.pattern.permute.xlu0 0
        %420 = vperm.xlu0 %419, %v364
        %v421 = vpop.permute.xlu0 %420
        %v423 = vmul.f32 %v355, %v421
        %v424 = vadd.f32 %v417, %v423
        %v425 = vlaneseq
        %v426 = vand.u32 %v425, 127
        %vm427 = vcmp.lt.s32.totalorder %v426, 0
        %v428 = vsub.s32 0, %v426
        %v429 = vsel %vm427, %v428, %v426
        %v430 = vshrl.u32 %v429, 4
        %v431 = vand.u32 %v429, 15
        %v432 = vsub.s32 0, %v431
        %v433 = vsel %vm427, %v432, %v431
        %vm434 = vcmp.ne.s32.totalorder %v433, 0
        %vm435 = vcmp.lt.s32.totalorder %v433, 0
        %vm436 = vmand %vm435, %vm434
        %v437 = vadd.s32 %v433, 16
        %v438 = vsel %vm436, %v437, %v433
        %440 = vrot.lane.b32.xlu0 %v384, 1
        %v441 = vpop.permute.xlu0 %440
        %vm443 = vcmask 7168
        %v444 = vsel %vm443, %v384, %v441
        %446 = vrot.lane.b32.xlu0 %v424, 127
        %v447 = vpop.permute.xlu0 %446
        %vm449 = vcmask 1039360
        %v450 = vsel %vm449, %v447, %v424
        %vm451 = vcmp.eq.s32.totalorder %v438, 0
        %v452 = vsel %vm451, 1, 0
        %vm453 = vcmp.eq.s32.totalorder %v452, 1
        %v454 = vsel %vm453, 0.0, %v444
        %v455 = vadd.f32 %v404, %v454
        %vm456 = vcmp.eq.s32.totalorder %v438, 15
        %v457 = vsel %vm456, 1, 0
        %vm458 = vcmp.eq.s32.totalorder %v457, 1
        %v459 = vsel %vm458, 0.0, %v450
        %v460 = vadd.f32 %v455, %v459
        %v461 = vld [vmem:[%s4] sm:$0xf]
        %v462 = vpack.c.bf16 %v460, %v460
        %v463 = vld [vmem:[%s5] sm:$0xff]
        %465 = vset.pattern.permute.xlu0 0
        %466 = vperm.xlu0 %465, %v463
        %v467 = vpop.permute.xlu0 %466
        %vm469 = vcmask 31744
        %v471 = vsel %vm469, %v461, 0
        %vm473 = vcmask 1041408
        %v475 = vsel %vm473, %v462, 0
        %477 = vmatpush.bf16.msra.mxu0 0
        %478 = vmatpush.bf16.msra.mxu0 0
        %479 = vmatpush.bf16.msra.mxu0 0
        %480 = vmatpush.bf16.msra.mxu0 0
        %481 = vmatpush.bf16.msra.mxu0 0
        %482 = vmatpush.bf16.msra.mxu0 0
        %483 = vmatpush.bf16.msra.mxu0 0
        %484 = vmatpush.bf16.msra.mxu0 %v475
        %485 = vmatmul.bf16.gmra.mxu0 %v471
        %v486 = vpop.f32.mrf.mxu0
        %v487 = vadd.f32 %v467, %v486
        %v488 = vpop.f32.mrf.mxu0
        %489 = vdwg.mxu0
        %v490 = vxor.u32 %v487, 2147483648
        %v491 = vmul.f32 %v490, 1.442695
        %v492 = vpow.pop %v491
        %v493 = vadd.f32 %v492, 1.0
        %v494 = vrcp.pop %v493
        %v495 = vmul.f32 %v493, %v494
        %v496 = vsub.f32 1.0, %v495
        %v497 = vmul.f32 %v494, %v496
        %v498 = vadd.f32 %v494, %v497
        %vm499 = vweird.f32 %v493
        %vm500 = vweird.f32 %v494
        %vm501 = vmor %vm499, %vm500
        %v502 = vsel %vm501, %v494, %v498
        %v503 = vand.u32 2147483647, %v493
        %vm504 = vcmp.eq.f32.partialorder %v503, 8.507059e+37
        %v505 = vand.u32 %v493, 2147483648
        %v506 = vor.u32 1.1754944e-38, %v505
        %v507 = vsel %vm504, %v506, %v502
        %v508 = vmul.f32 1.0, %v507
        %v509 = vmul.f32 %v487, %v508
        %510 = vst [vmem:[%s312] sm:$0xff] %v509
        %s511 = sand.u32 %s189, 1
        %s512 = scalar_lea.sflag [#allocation3], %s511
        %s513 = sand.u32 %s189, 1
        %s514 = smul.addr %s513, 8
        %s515 = scalar_lea.vmem [#allocation2], %s514
        // Predicated region
        $region45: #{tpu_custom_call.1} parent=43 // pred_check
          %p516 = pneg %p199
        $region46: #{tpu_custom_call.1} parent=43 // pred_check_branch
          %518 = sbr.rel (%p516) target = $region48
        $region47: #{tpu_custom_call.1} parent=43 // pred_region
          %520 = vsyncadd %s512, 0
          %s521 = smul.addr %s24, 2
          %s522 = sadd.s32 %s25, %s521
          %s523 = smul.addr %s522, 8
          %s524 = scalar_lea.hbm %s6, %s523
          %s526 = sshll.u32 %s515, 4
          %s527 = int_to_ptr.vmem [resolvable:$true] %s526
          %s528 = sshll.u32 %s524, 4
          %s529 = int_to_ptr.hbm [resolvable:$true] %s528
          %531 = dma.vmem_to_hbm [thread:$0]  %s527, 128, %s529, %s512
        $region48: #{tpu_custom_call.1} parent=43 // pred_fallthru
          _
      $region44: #{tpu_custom_call.1} parent=5 // pred_fallthru
        _
      %p532 = scmp.le.s32.totalorder 2, %s15
      // Predicated region
      $region49: #{tpu_custom_call.1} parent=5 // pred_check
        %p533 = pneg %p532
      $region50: #{tpu_custom_call.1} parent=5 // pred_check_branch
        %535 = sbr.rel (%p533) target = $region52
      $region51: #{tpu_custom_call.1} parent=5 // pred_region
        %s536 = ssub.s32 %s15, 2
        // Predicated region
        $region53: #{tpu_custom_call.1} parent=51 // pred_check
          %p537 = pneg %p205
        $region54: #{tpu_custom_call.1} parent=51 // pred_check_branch
          %539 = sbr.rel (%p537) target = $region56
        $region55: #{tpu_custom_call.1} parent=51 // pred_region
          %s540 = sand.u32 %s190, 1
          %s541 = scalar_lea.sflag [#allocation3], %s540
          %s542 = sand.u32 %s190, 1
          %s543 = smul.addr %s542, 8
          %s544 = scalar_lea.vmem [#allocation2], %s543
          %546 = dma.done %s541, 128
        $region56: #{tpu_custom_call.1} parent=51 // pred_fallthru
          _
      $region52: #{tpu_custom_call.1} parent=5 // pred_fallthru
        _
    $region6: #{tpu_custom_call.1} parent=1 // loop_footer
      %s19 = sadd.s32 1, %s15
    $region7: #{tpu_custom_call.1} parent=1 // loop_footer_branch
      %14 = sbr.rel target = $region3
    $region8: #{tpu_custom_call.1} parent=1 // loop_exit
      _
    %547 = vsyncpa [#allocation3], 1
    %s548 = scalar_lea.sflag [#allocation3], 1
    %549 = vsyncpa %s548, 1

</llo_original>
